<compile_context>
chip_gen: v7x
topology: tpu7x:2x2x1
jax: 0.10.0
libtpu: 0.0.40
codegen_flags: <defaults>
</compile_context>

<pallas_src>
import jax
import jax.numpy as jnp
from jax.experimental import pallas as pl
from jax.experimental.pallas import tpu as pltpu

LANES = 128
VPU_SEGSUM_MAX_BATCHES = 32   # above this, fall back to one-hot + MXU


def _round_up(x: int, m: int) -> int:
    return ((x + m - 1) // m) * m


def _cdiv(a: int, b: int) -> int:
    return -(-a // b)


def _device_kind() -> str:
    try:
        return jax.devices()[0].device_kind.lower()
    except Exception:
        return ""


def _make_kernel(num_terms: int, tile_rows: int, num_batches: int,
                 b_out: int, use_onehot: bool):
    def kernel(*refs):
        term_refs = refs[:num_terms]
        seg_ref = refs[num_terms]
        ea_ref = refs[num_terms + 1]
        e_ref = refs[num_terms + 2]

        t = pl.program_id(1)

        # ---- Ea_total = Ea + sum(E*a side terms): dense (tile_rows,128) adds ----
        total = term_refs[0][...]
        for r in term_refs[1:]:
            total = total + r[...]
        ea_ref[...] = total

        seg = seg_ref[...]                              # (tile_rows, 128) int32

        # ---- per-tile segment-sum contribution, lane-dense (1, b_out) ----
        if use_onehot:
            # One-hot + MXU fallback; batch dim shrunk to round_up(nb, 8).
            batch_ids = jax.lax.broadcasted_iota(
                jnp.int32, (tile_rows, b_out, LANES), 1)
            onehot = (seg[:, None, :] == batch_ids).astype(jnp.float32)
            e_rows = jnp.einsum('rql,rbl->rqb', total[:, None, :], onehot,
                                preferred_element_type=jnp.float32)
            contrib = jnp.sum(e_rows[:, 0, :], axis=0, keepdims=True)
        else:
            # Pure-VPU masked reduce, unrolled over the real batches.
            lane_ids = jax.lax.broadcasted_iota(jnp.int32, (1, b_out), 1)
            contrib = jnp.zeros((1, b_out), jnp.float32)
            for b in range(num_batches):
                masked = jnp.where(seg == b, total, 0.0)
                part = jnp.sum(jnp.sum(masked, axis=1, keepdims=True),
                               axis=0, keepdims=True)    # (1, 1)
                contrib = contrib + jnp.where(lane_ids == b, part, 0.0)

        # ---- resident output accumulator (same E block across t) ----
        @pl.when(t == 0)
        def _init():
            e_ref[...] = jnp.zeros_like(e_ref)

        e_ref[...] += contrib[None]                     # (1, 1, b_out)

    return kernel


def energy_reduce(net_input: dict, num_batches: int) -> dict:
    """JAX/Pallas equivalent of EnergyReduceLayer.forward.

    `num_batches` is the static number of segments (batch_seg.max() + 1).
    """
    output = dict(net_input)

    ea = net_input['Ea']
    n_atoms = ea.shape[0]

    extra_keys = sorted(
        k for k in net_input if k[0] == 'E' and k[-1] == 'a' and len(k) > 2)
    term_arrays = [ea] + [net_input[k] for k in extra_keys]
    num_terms = len(term_arrays)

    if 'batch_seg' in net_input:
        batch_seg = net_input['batch_seg']
    else:
        batch_seg = jnp.zeros_like(net_input['Za'])
    batch_seg = batch_seg.astype(jnp.int32)

    # ---- chip-generation gating ----
    kind = _device_kind()
    multi_tc = ('v7' in kind) or ('v4' in kind)     # 2 TCs / megacore
    max_tile_rows = 64 if 'v7' in kind else 128     # v7x: 64 MiB VMEM only

    # ---- segment-sum strategy ----
    use_onehot = num_batches > VPU_SEGSUM_MAX_BATCHES
    if use_onehot:
        b_out = _round_up(max(num_batches, 1), 8)
        max_tile_rows = min(max_tile_rows, 64)      # bound onehot intermediates
    else:
        b_out = LANES                               # lane-dense (1, 128) acc

    # ---- tiling / grid ----
    rows_needed = _cdiv(max(n_atoms, 1), LANES)
    tile_rows = min(max_tile_rows, _round_up(rows_needed, 8))
    n_tiles = _cdiv(rows_needed, tile_rows)
    n_split = 2 if (multi_tc and n_tiles >= 2) else 1
    inner = _cdiv(n_tiles, n_split)
    rows_pad = n_split * inner * tile_rows
    n_pad = rows_pad * LANES
    pad = n_pad - n_atoms

    # ---- pack inputs (no jnp.stack; each term is its own BlockSpec input) ----
    terms_2d = [
        jnp.pad(v.astype(jnp.float32), (0, pad)).reshape(rows_pad, LANES)
        for v in term_arrays
    ]
    seg_2d = jnp.pad(batch_seg, (0, pad),
                     constant_values=-1).reshape(rows_pad, LANES)

    kernel = _make_kernel(num_terms, tile_rows, num_batches, b_out, use_onehot)

    def atom_spec():
        return pl.BlockSpec((tile_rows, LANES), lambda s, t: (s * inner + t, 0))

    cost = pl.CostEstimate(
        flops=(num_terms + 3) * n_pad,
        transcendentals=0,
        bytes_accessed=(num_terms + 2) * n_pad * 4 + n_split * b_out * 4)

    ea_out, e_out = pl.pallas_call(
        kernel,
        grid_spec=pltpu.PrefetchScalarGridSpec(
            num_scalar_prefetch=0,
            grid=(n_split, inner),
            in_specs=[atom_spec() for _ in range(num_terms + 1)],
            out_specs=[
                atom_spec(),
                pl.BlockSpec((1, 1, b_out), lambda s, t: (s, 0, 0)),
            ],
        ),
        out_shape=(
            jax.ShapeDtypeStruct((rows_pad, LANES), jnp.float32),
            jax.ShapeDtypeStruct((n_split, 1, b_out), jnp.float32),
        ),
        compiler_params=pltpu.CompilerParams(
            dimension_semantics=("parallel", "arbitrary"),
            vmem_limit_bytes=32 * 1024 * 1024),
        cost_estimate=cost,
    )(*terms_2d, seg_2d)

    output['Ea'] = ea_out.reshape(n_pad)[:n_atoms].astype(ea.dtype)
    output['E'] = jnp.sum(e_out[:, 0, :], axis=0)[:num_batches].astype(ea.dtype)
    return output


def _reference(net_input: dict, num_batches: int) -> dict:
    """Pure-JAX reference mirroring the torch module (incl. in-place += alias)."""
    out = dict(net_input)
    ea_total = net_input['Ea']
    for k, v in net_input.items():
        if k[0] == 'E' and k[-1] == 'a' and len(k) > 2:
            ea_total = ea_total + v
    out['Ea'] = ea_total
    if 'batch_seg' in net_input:
        seg = net_input['batch_seg']
    else:
        seg = jnp.zeros_like(net_input['Za'])
    out['E'] = jax.ops.segment_sum(ea_total, seg.astype(jnp.int32),
                                   num_segments=num_batches)
    return out


def _check(net_input, num_batches, atol):
    out = energy_reduce(net_input, num_batches)
    jax.block_until_ready(out['E'])
    jax.block_until_ready(out['Ea'])
    ref = _reference(net_input, num_batches)
    assert jnp.allclose(out['Ea'], ref['Ea'], atol=atol), "Ea mismatch"
    assert jnp.allclose(out['E'], ref['E'], atol=atol, rtol=1e-4), "E mismatch"
    assert jnp.array_equal(out['Za'], net_input['Za'])
    for k in net_input:
        if k not in ('Ea', 'E'):
            assert jnp.array_equal(out[k], net_input[k])
    return out


if __name__ == "__main__":
    key = jax.random.PRNGKey(0)
    k1, k2, k3, k4, k5, k6, k7, k8, k9, k10 = jax.random.split(key, 10)

    # --- small case (single tile, VPU masked-reduce path) ---
    n_atoms = 16
    num_batches = 2
    net_input = {
        'Za': jax.random.randint(k1, (n_atoms,), 1, 10, dtype=jnp.int32),
        'Ea': jax.random.normal(k2, (n_atoms,), dtype=jnp.float32),
        'E_rep_a': jax.random.normal(k3, (n_atoms,), dtype=jnp.float32),
        'E_disp_a': jax.random.normal(k4, (n_atoms,), dtype=jnp.float32),
        'batch_seg': jnp.concatenate(
            [jnp.zeros(8, jnp.int32), jnp.ones(8, jnp.int32)]),
    }
    _check(net_input, num_batches, atol=1e-5)

    # --- larger case: tiled grid (+ 2-way split on multi-TC chips) + padding ---
    n_atoms2 = 20480
    num_batches2 = 7
    net_input2 = {
        'Za': jax.random.randint(k5, (n_atoms2,), 1, 10, dtype=jnp.int32),
        'Ea': jax.random.normal(k6, (n_atoms2,), dtype=jnp.float32),
        'E_rep_a': jax.random.normal(k7, (n_atoms2,), dtype=jnp.float32),
        'E_disp_a': jax.random.normal(k8, (n_atoms2,), dtype=jnp.float32),
        'batch_seg': jax.random.randint(k5, (n_atoms2,), 0, num_batches2,
                                        dtype=jnp.int32),
    }
    _check(net_input2, num_batches2, atol=1e-3)

    # --- many-segment case: exercises the one-hot/MXU fallback (b_out = 40) ---
    n_atoms3 = 4096
    num_batches3 = 40
    net_input3 = {
        'Za': jax.random.randint(k9, (n_atoms3,), 1, 10, dtype=jnp.int32),
        'Ea': jax.random.normal(k10, (n_atoms3,), dtype=jnp.float32),
        'E_rep_a': jax.random.normal(k9, (n_atoms3,), dtype=jnp.float32),
        'batch_seg': jax.random.randint(k10, (n_atoms3,), 0, num_batches3,
                                        dtype=jnp.int32),
    }
    _check(net_input3, num_batches3, atol=1e-3)

    print("KERNEL_OK")
</pallas_src>

<mosaic_0001>
module attributes {stable_mosaic.version = 11 : i64} {
  func.func @kernel(%arg0: i32, %arg1: i32, %arg2: memref<8x128xf32, #tpu.memory_space<vmem>>, %arg3: memref<8x128xf32, #tpu.memory_space<vmem>>, %arg4: memref<8x128xf32, #tpu.memory_space<vmem>>, %arg5: memref<8x128xi32, #tpu.memory_space<vmem>>, %arg6: memref<8x128xf32, #tpu.memory_space<vmem>>, %arg7: memref<1x1x128xf32, #tpu.memory_space<vmem>>) attributes {dimension_semantics = [#tpu.dimension_semantics<parallel>, #tpu.dimension_semantics<arbitrary>], iteration_bounds = array<i64: 1, 1>, scalar_prefetch = 0 : i64, scratch_operands = 0 : i64, tpu.core_type = #tpu.core_type<tc>, window_params = [{transform_indices = @transform_0, window_bounds = array<i64: 8, 128>}, {transform_indices = @transform_1, window_bounds = array<i64: 8, 128>}, {transform_indices = @transform_2, window_bounds = array<i64: 8, 128>}, {transform_indices = @transform_3, window_bounds = array<i64: 8, 128>}, {transform_indices = @transform_4, window_bounds = array<i64: 8, 128>}, {transform_indices = @transform_5, window_bounds = array<i64: 1, 1, 128>}]} {
    %c0 = arith.constant 0 : index
    %c0_0 = arith.constant 0 : index
    %0 = vector.load %arg2[%c0, %c0_0] : memref<8x128xf32, #tpu.memory_space<vmem>>, vector<8x128xf32>
    %c0_1 = arith.constant 0 : index
    %c0_2 = arith.constant 0 : index
    %1 = vector.load %arg3[%c0_1, %c0_2] : memref<8x128xf32, #tpu.memory_space<vmem>>, vector<8x128xf32>
    %2 = arith.addf %0, %1 : vector<8x128xf32>
    %c0_3 = arith.constant 0 : index
    %c0_4 = arith.constant 0 : index
    %3 = vector.load %arg4[%c0_3, %c0_4] : memref<8x128xf32, #tpu.memory_space<vmem>>, vector<8x128xf32>
    %4 = arith.addf %2, %3 : vector<8x128xf32>
    %c0_5 = arith.constant 0 : index
    %c0_6 = arith.constant 0 : index
    %5 = vector.load %arg6[%c0_5, %c0_6] : memref<8x128xf32, #tpu.memory_space<vmem>>, vector<8x128xf32>
    tpu.vector_store %arg6[%c0_5, %c0_6], %4 {strides = array<i32>} : memref<8x128xf32, #tpu.memory_space<vmem>>, vector<8x128xf32>,
    %c0_7 = arith.constant 0 : index
    %c0_8 = arith.constant 0 : index
    %6 = vector.load %arg5[%c0_7, %c0_8] : memref<8x128xi32, #tpu.memory_space<vmem>>, vector<8x128xi32>
    %7 = tpu.iota {dimensions = array<i32: 1>} : vector<1x128xi32>
    %cst = arith.constant 0.000000e+00 : f32
    %8 = vector.broadcast %cst : f32 to vector<1x128xf32>
    %c0_i32 = arith.constant 0 : i32
    %9 = vector.broadcast %c0_i32 : i32 to vector<8x128xi32>
    %10 = arith.cmpi eq, %6, %9 : vector<8x128xi32>
    %cst_9 = arith.constant 0.000000e+00 : f32
    %11 = vector.broadcast %cst_9 : f32 to vector<8x128xf32>
    %12 = arith.select %10, %4, %11 : vector<8x128xi1>, vector<8x128xf32>
    %cst_10 = arith.constant dense<0.000000e+00> : vector<8xf32>
    %13 = vector.multi_reduction <add>, %12, %cst_10 [1] : vector<8x128xf32> to vector<8xf32>
    %14 = vector.shape_cast %13 : vector<8xf32> to vector<8x1xf32>
    %cst_11 = arith.constant dense<0.000000e+00> : vector<1xf32>
    %15 = vector.multi_reduction <add>, %14, %cst_11 [0] : vector<8x1xf32> to vector<1xf32>
    %16 = vector.shape_cast %15 : vector<1xf32> to vector<1x1xf32>
    %c0_i32_12 = arith.constant 0 : i32
    %17 = vector.broadcast %c0_i32_12 : i32 to vector<1x128xi32>
    %18 = arith.cmpi eq, %7, %17 : vector<1x128xi32>
    %cst_13 = arith.constant 0.000000e+00 : f32
    %19 = vector.shape_cast %16 : vector<1x1xf32> to vector<1x1xf32>
    %20 = vector.broadcast %19 : vector<1x1xf32> to vector<1x128xf32>
    %21 = vector.broadcast %cst_13 : f32 to vector<1x128xf32>
    %22 = arith.select %18, %20, %21 : vector<1x128xi1>, vector<1x128xf32>
    %23 = arith.addf %8, %22 : vector<1x128xf32>
    %c1_i32 = arith.constant 1 : i32
    %24 = vector.broadcast %c1_i32 : i32 to vector<8x128xi32>
    %25 = arith.cmpi eq, %6, %24 : vector<8x128xi32>
    %cst_14 = arith.constant 0.000000e+00 : f32
    %26 = vector.broadcast %cst_14 : f32 to vector<8x128xf32>
    %27 = arith.select %25, %4, %26 : vector<8x128xi1>, vector<8x128xf32>
    %cst_15 = arith.constant dense<0.000000e+00> : vector<8xf32>
    %28 = vector.multi_reduction <add>, %27, %cst_15 [1] : vector<8x128xf32> to vector<8xf32>
    %29 = vector.shape_cast %28 : vector<8xf32> to vector<8x1xf32>
    %cst_16 = arith.constant dense<0.000000e+00> : vector<1xf32>
    %30 = vector.multi_reduction <add>, %29, %cst_16 [0] : vector<8x1xf32> to vector<1xf32>
    %31 = vector.shape_cast %30 : vector<1xf32> to vector<1x1xf32>
    %c1_i32_17 = arith.constant 1 : i32
    %32 = vector.broadcast %c1_i32_17 : i32 to vector<1x128xi32>
    %33 = arith.cmpi eq, %7, %32 : vector<1x128xi32>
    %cst_18 = arith.constant 0.000000e+00 : f32
    %34 = vector.shape_cast %31 : vector<1x1xf32> to vector<1x1xf32>
    %35 = vector.broadcast %34 : vector<1x1xf32> to vector<1x128xf32>
    %36 = vector.broadcast %cst_18 : f32 to vector<1x128xf32>
    %37 = arith.select %33, %35, %36 : vector<1x128xi1>, vector<1x128xf32>
    %38 = arith.addf %23, %37 : vector<1x128xf32>
    %c0_i32_19 = arith.constant 0 : i32
    %39 = arith.cmpi eq, %arg1, %c0_i32_19 : i32
    %40 = arith.extui %39 : i1 to i32
    %c0_i32_20 = arith.constant 0 : i32
    %41 = arith.cmpi ne, %40, %c0_i32_20 : i32
    scf.if %41 {
      %cst_27 = arith.constant 0.000000e+00 : f32
      %46 = vector.broadcast %cst_27 : f32 to vector<1x1x128xf32>
      %c0_28 = arith.constant 0 : index
      %c0_29 = arith.constant 0 : index
      %c0_30 = arith.constant 0 : index
      %47 = vector.load %arg7[%c0_28, %c0_29, %c0_30] : memref<1x1x128xf32, #tpu.memory_space<vmem>>, vector<1x1x128xf32>
      tpu.vector_store %arg7[%c0_28, %c0_29, %c0_30], %46 {strides = array<i32>} : memref<1x1x128xf32, #tpu.memory_space<vmem>>, vector<1x1x128xf32>,
    } else {
    }
    %c0_21 = arith.constant 0 : index
    %c0_22 = arith.constant 0 : index
    %c0_23 = arith.constant 0 : index
    %42 = vector.load %arg7[%c0_21, %c0_22, %c0_23] : memref<1x1x128xf32, #tpu.memory_space<vmem>>, vector<1x1x128xf32>
    %43 = vector.shape_cast %38 : vector<1x128xf32> to vector<1x1x128xf32>
    %44 = arith.addf %42, %43 : vector<1x1x128xf32>
    %c0_24 = arith.constant 0 : index
    %c0_25 = arith.constant 0 : index
    %c0_26 = arith.constant 0 : index
    %45 = vector.load %arg7[%c0_24, %c0_25, %c0_26] : memref<1x1x128xf32, #tpu.memory_space<vmem>>, vector<1x1x128xf32>
    tpu.vector_store %arg7[%c0_24, %c0_25, %c0_26], %44 {strides = array<i32>} : memref<1x1x128xf32, #tpu.memory_space<vmem>>, vector<1x1x128xf32>,
    return
  }
  func.func @transform_0(%arg0: i32, %arg1: i32) -> (i32, i32) {
    %c1_i32 = arith.constant 1 : i32
    %0 = arith.muli %arg0, %c1_i32 : i32
    %1 = arith.addi %0, %arg1 : i32
    %c0_i32 = arith.constant 0 : i32
    %c0_i32_0 = arith.constant 0 : i32
    return %1, %c0_i32 : i32, i32
  }
  func.func @transform_1(%arg0: i32, %arg1: i32) -> (i32, i32) {
    %c1_i32 = arith.constant 1 : i32
    %0 = arith.muli %arg0, %c1_i32 : i32
    %1 = arith.addi %0, %arg1 : i32
    %c0_i32 = arith.constant 0 : i32
    %c0_i32_0 = arith.constant 0 : i32
    return %1, %c0_i32 : i32, i32
  }
  func.func @transform_2(%arg0: i32, %arg1: i32) -> (i32, i32) {
    %c1_i32 = arith.constant 1 : i32
    %0 = arith.muli %arg0, %c1_i32 : i32
    %1 = arith.addi %0, %arg1 : i32
    %c0_i32 = arith.constant 0 : i32
    %c0_i32_0 = arith.constant 0 : i32
    return %1, %c0_i32 : i32, i32
  }
  func.func @transform_3(%arg0: i32, %arg1: i32) -> (i32, i32) {
    %c1_i32 = arith.constant 1 : i32
    %0 = arith.muli %arg0, %c1_i32 : i32
    %1 = arith.addi %0, %arg1 : i32
    %c0_i32 = arith.constant 0 : i32
    %c0_i32_0 = arith.constant 0 : i32
    return %1, %c0_i32 : i32, i32
  }
  func.func @transform_4(%arg0: i32, %arg1: i32) -> (i32, i32) {
    %c1_i32 = arith.constant 1 : i32
    %0 = arith.muli %arg0, %c1_i32 : i32
    %1 = arith.addi %0, %arg1 : i32
    %c0_i32 = arith.constant 0 : i32
    %c0_i32_0 = arith.constant 0 : i32
    return %1, %c0_i32 : i32, i32
  }
  func.func @transform_5(%arg0: i32, %arg1: i32) -> (i32, i32, i32) {
    %c0_i32 = arith.constant 0 : i32
    %c0_i32_0 = arith.constant 0 : i32
    %c0_i32_1 = arith.constant 0 : i32
    return %arg0, %c0_i32, %c0_i32_0 : i32, i32, i32
  }
}

</mosaic_0001>

<llo_original>
// kernel: tpu_custom_call.1
$region0: #{tpu_custom_call.1}
  #allocation0 [shape = 'u32[]', space=smem, size = 0x4, offset = 0x4, fixed_abs, tag = 'smem constant byte address 0x4 - core index']
  #allocation1 [shape = 'u32[144,128]{1,0:T(1,128)}', space=vmem, size = 0x12000, scoped, tag = 'internal scratch']
  %s0 = inlined_call_operand.hbm [shape: f32[8,128], index: 0, kind: input, shape index: {}]
  %s1 = inlined_call_operand.hbm [shape: f32[8,128], index: 1, kind: input, shape index: {}]
  %s2 = inlined_call_operand.hbm [shape: f32[8,128], index: 2, kind: input, shape index: {}]
  %s3 = inlined_call_operand.vmem [shape: s32[8,128], index: 3, kind: input, shape index: {}]
  %s4 = inlined_call_operand.hbm [shape: f32[8,128], index: 4, kind: output, shape index: {0}]
  %s5 = inlined_call_operand.hbm [shape: f32[1,1,128], index: 5, kind: output, shape index: {1}]
  %6 = xla_tuple %s4, %s5
  %s7 = sld [smem:[#allocation0]]
  $region50: #{tpu_custom_call.1} parent=0
    _
  %s9 = ssub.s32 1, %s7
  %s10 = scalar_select 0, %s9, %s7
  $region1: #{tpu_custom_call.1} parent=0
    #allocation2 [shape = 'u8[4096]{0}', space=vmem, size = 0x1000, scoped, tag = 'input window, operand 0, single buffered']
    #allocation3 [shape = 's32[1]{0}', space=sflag, size = 0x4, scoped, tag = 'scoped memory for tpu_custom_call.1']
    #allocation4 [shape = 's32[1]{0}', space=sflag, size = 0x4, scoped, tag = 'scoped memory for tpu_custom_call.1']
    #allocation5 [shape = 'u8[4096]{0}', space=vmem, size = 0x1000, scoped, tag = 'input window, operand 1, single buffered']
    #allocation6 [shape = 's32[1]{0}', space=sflag, size = 0x4, scoped, tag = 'scoped memory for tpu_custom_call.1']
    #allocation7 [shape = 'u8[4096]{0}', space=vmem, size = 0x1000, scoped, tag = 'input window, operand 2, single buffered']
    #allocation8 [shape = 'u8[4096]{0}', space=vmem, size = 0x1000, scoped, tag = 'output window, operand 0, single buffered']
    #allocation9 [shape = 'u8[512]{0}', space=vmem, size = 0x400, scoped, tag = 'output window, operand 1, single buffered']
    #allocation10 [shape = 's32[1]{0}', space=sflag, size = 0x4, scoped, tag = 'scoped memory for tpu_custom_call.1']
    %11 = vsyncpa [#allocation3], 0
    %12 = vsyncpa [#allocation6], 0
    %13 = vsyncpa [#allocation4], 0
    %14 = vsyncpa [#allocation10], 0
    // Predicated region
    $region2: #{tpu_custom_call.1} parent=1 // pred_check
      _
    $region3: #{tpu_custom_call.1} parent=1 // pred_check_branch
      %16 = sbr.rel (0) target = $region5
    $region4: #{tpu_custom_call.1} parent=1 // pred_region
      %s17 = sadd.s32 0, 0
      %s19 = ssub.s32 128, 128
      %20 = vsyncadd [#allocation3], %s19
      %s21 = smul.addr %s17, 128
      %s22 = scalar_lea.hbm %s0, %s21
      %s24 = sshll.u32 [#allocation2], 4
      %s25 = int_to_ptr.vmem [resolvable:$true] %s24
      %27 = dma.hbm_to_vmem [thread:$0]  %s22, 128, %s25, [#allocation3]
    $region5: #{tpu_custom_call.1} parent=1 // pred_fallthru
      _
    // Predicated region
    $region6: #{tpu_custom_call.1} parent=1 // pred_check
      _
    $region7: #{tpu_custom_call.1} parent=1 // pred_check_branch
      %29 = sbr.rel (0) target = $region9
    $region8: #{tpu_custom_call.1} parent=1 // pred_region
      %s30 = sadd.s32 0, 0
      %s32 = ssub.s32 128, 128
      %33 = vsyncadd [#allocation6], %s32
      %s34 = smul.addr %s30, 128
      %s35 = scalar_lea.hbm %s1, %s34
      %s37 = sshll.u32 [#allocation5], 4
      %s38 = int_to_ptr.vmem [resolvable:$true] %s37
      %40 = dma.hbm_to_vmem [thread:$0]  %s35, 128, %s38, [#allocation6]
    $region9: #{tpu_custom_call.1} parent=1 // pred_fallthru
      _
    // Predicated region
    $region10: #{tpu_custom_call.1} parent=1 // pred_check
      _
    $region11: #{tpu_custom_call.1} parent=1 // pred_check_branch
      %42 = sbr.rel (0) target = $region13
    $region12: #{tpu_custom_call.1} parent=1 // pred_region
      %s43 = sadd.s32 0, 0
      %s45 = ssub.s32 128, 128
      %46 = vsyncadd [#allocation6], %s45
      %s47 = smul.addr %s43, 128
      %s48 = scalar_lea.hbm %s2, %s47
      %s50 = sshll.u32 [#allocation7], 4
      %s51 = int_to_ptr.vmem [resolvable:$true] %s50
      %53 = dma.hbm_to_vmem [thread:$0]  %s48, 128, %s51, [#allocation6]
    $region13: #{tpu_custom_call.1} parent=1 // pred_fallthru
      _
    // Predicated region
    $region14: #{tpu_custom_call.1} parent=1 // pred_check
      _
    $region15: #{tpu_custom_call.1} parent=1 // pred_check_branch
      %55 = sbr.rel (0) target = $region17
    $region16: #{tpu_custom_call.1} parent=1 // pred_region
      %s56 = sadd.s32 0, 0
      %p57 = scmp.lt.s32.totalorder %s56, 0
      %s58 = scalar_select %p57, %s56, 0
      %s59 = smul.addr %s58, 8
      %s60 = scalar_lea.vmem %s3, %s59
      %s61 = sadd.s32 0, 0
    $region17: #{tpu_custom_call.1} parent=1 // pred_fallthru
      _
    // Predicated region
    $region18: #{tpu_custom_call.1} parent=1 // pred_check
      _
    $region19: #{tpu_custom_call.1} parent=1 // pred_check_branch
      %63 = sbr.rel (0) target = $region21
    $region20: #{tpu_custom_call.1} parent=1 // pred_region
      %64 = dma.done [#allocation3], 128
    $region21: #{tpu_custom_call.1} parent=1 // pred_fallthru
      _
    // Predicated region
    $region22: #{tpu_custom_call.1} parent=1 // pred_check
      _
    $region23: #{tpu_custom_call.1} parent=1 // pred_check_branch
      %66 = sbr.rel (0) target = $region25
    $region24: #{tpu_custom_call.1} parent=1 // pred_region
      %67 = dma.done [#allocation6], 128
    $region25: #{tpu_custom_call.1} parent=1 // pred_fallthru
      _
    // Predicated region
    $region26: #{tpu_custom_call.1} parent=1 // pred_check
      _
    $region27: #{tpu_custom_call.1} parent=1 // pred_check_branch
      %69 = sbr.rel (0) target = $region29
    $region28: #{tpu_custom_call.1} parent=1 // pred_region
      %70 = dma.done [#allocation6], 128
    $region29: #{tpu_custom_call.1} parent=1 // pred_fallthru
      _
    %s71 = sadd.s32 0, 0
    %p72 = scmp.lt.s32.totalorder %s71, 0
    %s73 = scalar_select %p72, %s71, 0
    %s74 = smul.addr %s73, 8
    %s75 = scalar_lea.vmem %s3, %s74
    %s76 = sadd.s32 0, 0
    %s77 = sadd.s32 0, 0
    %s78 = sadd.s32 0, 0
    %s79 = sadd.s32 0, 0
    %p80 = scmp.lt.s32.totalorder %s79, 0
    %s81 = scalar_select %p80, %s79, 0
    %s82 = smul.addr %s81, 8
    %s83 = scalar_lea.vmem %s3, %s82
    %s84 = sadd.s32 0, 0
    %s85 = sadd.s32 0, 0
    %v86 = vld [vmem:[#allocation2] sm:$0xff]
    %v87 = vld [vmem:[#allocation5] sm:$0xff]
    %v88 = vadd.f32 %v86, %v87
    %v89 = vld [vmem:[#allocation7] sm:$0xff]
    %v90 = vadd.f32 %v88, %v89
    %91 = vst [vmem:[#allocation8] sm:$0xff] %v90
    %v92 = vld [vmem:[%s83] sm:$0xff]
    %v93 = vlaneseq
    %v94 = vand.u32 %v93, 127
    %vm95 = vcmp.eq.s32.totalorder %v92, 0
    %v96 = vsel %vm95, %v90, 0.0
    %97 = vadd.xlane.f32.xlu0 %v96
    %v98 = vpop.xlane.xlu0 %97
    %v99 = vrot.slane %v98, 4
    %v100 = vadd.f32 %v98, %v99
    %v101 = vrot.slane %v100, 2
    %v102 = vadd.f32 %v100, %v101
    %v103 = vrot.slane %v102, 1
    %v104 = vadd.f32 %v102, %v103
    %vm105 = vcmp.eq.s32.totalorder %v94, 0
    %v106 = vsel %vm105, %v104, 0.0
    %v107 = vadd.f32 %v106, 0.0
    %vm108 = vcmp.eq.s32.totalorder %v92, 1
    %v109 = vsel %vm108, %v90, 0.0
    %110 = vadd.xlane.f32.xlu0 %v109
    %v111 = vpop.xlane.xlu0 %110
    %v112 = vrot.slane %v111, 4
    %v113 = vadd.f32 %v111, %v112
    %v114 = vrot.slane %v113, 2
    %v115 = vadd.f32 %v113, %v114
    %v116 = vrot.slane %v115, 1
    %v117 = vadd.f32 %v115, %v116
    %vm118 = vcmp.eq.s32.totalorder %v94, 1
    %v119 = vsel %vm118, %v117, 0.0
    %v120 = vadd.f32 %v107, %v119
    %p121 = scmp.eq.s32.totalorder 0, 0
    // Predicated region
    $region30: #{tpu_custom_call.1} parent=1 // pred_check
      %p122 = pneg %p121
    $region31: #{tpu_custom_call.1} parent=1 // pred_check_branch
      %124 = sbr.rel (%p122) target = $region33
    $region32: #{tpu_custom_call.1} parent=1 // pred_region
      %125 = vst [vmem:[#allocation9] sm:$0x1] 0.0
    $region33: #{tpu_custom_call.1} parent=1 // pred_fallthru
      _
    %v126 = vld [vmem:[#allocation9] sm:$0x1]
    %v127 = vadd.f32 %v126, %v120
    %128 = vst [vmem:[#allocation9] sm:$0x1] %v127
    // Predicated region
    $region34: #{tpu_custom_call.1} parent=1 // pred_check
      _
    $region35: #{tpu_custom_call.1} parent=1 // pred_check_branch
      %130 = sbr.rel (0) target = $region37
    $region36: #{tpu_custom_call.1} parent=1 // pred_region
      %s131 = sadd.s32 0, 0
      %s133 = ssub.s32 128, 128
      %134 = vsyncadd [#allocation4], %s133
      %s135 = smul.addr %s131, 128
      %s136 = scalar_lea.hbm %s4, %s135
      %s138 = sshll.u32 [#allocation8], 4
      %s139 = int_to_ptr.vmem [resolvable:$true] %s138
      %141 = dma.vmem_to_hbm [thread:$0]  %s139, 128, %s136, [#allocation4]
    $region37: #{tpu_custom_call.1} parent=1 // pred_fallthru
      _
    // Predicated region
    $region38: #{tpu_custom_call.1} parent=1 // pred_check
      _
    $region39: #{tpu_custom_call.1} parent=1 // pred_check_branch
      %143 = sbr.rel (0) target = $region41
    $region40: #{tpu_custom_call.1} parent=1 // pred_region
      %s145 = ssub.s32 16, 16
      %146 = vsyncadd [#allocation10], %s145
      %s148 = sshll.u32 [#allocation9], 4
      %s149 = int_to_ptr.vmem [resolvable:$true] %s148
      %151 = dma.vmem_to_hbm [thread:$0]  %s149, 16, %s5, [#allocation10]
    $region41: #{tpu_custom_call.1} parent=1 // pred_fallthru
      _
    // Predicated region
    $region42: #{tpu_custom_call.1} parent=1 // pred_check
      _
    $region43: #{tpu_custom_call.1} parent=1 // pred_check_branch
      %153 = sbr.rel (0) target = $region45
    $region44: #{tpu_custom_call.1} parent=1 // pred_region
      %154 = dma.done [#allocation4], 128
    $region45: #{tpu_custom_call.1} parent=1 // pred_fallthru
      _
    // Predicated region
    $region46: #{tpu_custom_call.1} parent=1 // pred_check
      _
    $region47: #{tpu_custom_call.1} parent=1 // pred_check_branch
      %156 = sbr.rel (0) target = $region49
    $region48: #{tpu_custom_call.1} parent=1 // pred_region
      %157 = dma.done [#allocation10], 16
    $region49: #{tpu_custom_call.1} parent=1 // pred_fallthru
      _
    %158 = vsyncpa [#allocation3], 1
    %159 = vsyncpa [#allocation6], 1
    %160 = vsyncpa [#allocation4], 1
    %161 = vsyncpa [#allocation10], 1

</llo_original>
